<compile_context>
chip_gen: v7x
topology: tpu7x:2x2x1
jax: 0.10.0
libtpu: 0.0.40
codegen_flags: <defaults>
</compile_context>

<pallas_src>
import jax
import jax.numpy as jnp
from jax.experimental import pallas as pl
from jax.experimental.pallas import tpu as pltpu


def mlp_kernel(x_ref, w1_ref, b1_ref, w2_ref, b2_ref, o_ref):
    xT = x_ref[...]    # (F, TN)  batch on lanes
    w1 = w1_ref[...]   # (H, F)   PyTorch layout: (out_features, in_features)
    b1 = b1_ref[...]   # (H, 1)
    w2 = w2_ref[...]   # (O, H)
    b2 = b2_ref[...]   # (O, 1)

    n_feature = w1.shape[1]
    n_hidden = w2.shape[1]

    # hidden = relu(W1 @ xT + b1) as an F-term (F=2) VPU FMA chain,
    # bias folded into the first term (no separate bias pass).
    h = w1[:, 0:1] * xT[0:1, :] + b1                      # (H, TN)
    for k in range(1, n_feature):
        h = h + w1[:, k:k + 1] * xT[k:k + 1, :]
    h = jnp.maximum(h, 0.0)                               # F.relu

    # out = W2 @ hT + b2 as an H-term (H=10) VPU FMA chain.
    out = w2[:, 0:1] * h[0:1, :] + b2                     # (O, TN)
    for k in range(1, n_hidden):
        out = out + w2[:, k:k + 1] * h[k:k + 1, :]

    o_ref[...] = out.astype(o_ref.dtype)


def net_forward(x, w1, b1, w2, b2, *, tn=128):
    """x: (N, F) row-major like PyTorch; weights in PyTorch (out, in) layout,
    biases stored as (out, 1). Returns (N, O)."""
    n, n_feature = x.shape
    n_hidden = w1.shape[0]
    n_out = w2.shape[0]

    # Pad batch to a multiple of the lane tile and transpose -> (F, Np).
    n_pad = pl.cdiv(n, tn) * tn
    xT = jnp.zeros((n_feature, n_pad), x.dtype).at[:, :n].set(x.T)

    outT = pl.pallas_call(
        mlp_kernel,
        out_shape=jax.ShapeDtypeStruct((n_out, n_pad), jnp.float32),
        grid_spec=pltpu.PrefetchScalarGridSpec(
            num_scalar_prefetch=0,
            grid=(n_pad // tn,),
            in_specs=[
                # activations stream over the batch/lane axis
                pl.BlockSpec((n_feature, tn), lambda i: (0, i)),
                # tiny weights/biases: same block every step -> stay resident
                pl.BlockSpec((n_hidden, n_feature), lambda i: (0, 0)),
                pl.BlockSpec((n_hidden, 1), lambda i: (0, 0)),
                pl.BlockSpec((n_out, n_hidden), lambda i: (0, 0)),
                pl.BlockSpec((n_out, 1), lambda i: (0, 0)),
            ],
            out_specs=pl.BlockSpec((n_out, tn), lambda i: (0, i)),
        ),
        compiler_params=pltpu.CompilerParams(
            dimension_semantics=("parallel",),   # shard batch tiles across TCs (v7x)
            vmem_limit_bytes=32 * 1024 * 1024,   # explicit; tiny tiles fit everywhere
        ),
    )(xT, w1, b1, w2, b2)

    # Back to PyTorch (N, O) layout, dropping the padded batch columns.
    return outT[:, :n].T


def init_linear_params(key, n_in, n_out):
    # PyTorch nn.Linear default init: U(-1/sqrt(fan_in), 1/sqrt(fan_in)),
    # weight stored in PyTorch layout (n_out, n_in), bias as (n_out, 1).
    kw, kb = jax.random.split(key)
    bound = 1.0 / (n_in ** 0.5)
    w = jax.random.uniform(kw, (n_out, n_in), jnp.float32, -bound, bound)
    b = jax.random.uniform(kb, (n_out, 1), jnp.float32, -bound, bound)
    return w, b


if __name__ == "__main__":
    n_feature, n_hidden, n_output = 2, 10, 2

    key = jax.random.PRNGKey(0)
    k_data0, k_data1, k_l1, k_l2 = jax.random.split(key, 4)

    # Reproduce the script's synthetic 2-class data (two Gaussian blobs).
    n_data = jnp.ones((100, 2), jnp.float32)
    x0 = 2.0 * n_data + jax.random.normal(k_data0, (100, 2), jnp.float32)
    x1 = -2.0 * n_data + jax.random.normal(k_data1, (100, 2), jnp.float32)
    x = jnp.concatenate([x0, x1], axis=0).astype(jnp.float32)   # (200, 2)

    w1, b1 = init_linear_params(k_l1, n_feature, n_hidden)
    w2, b2 = init_linear_params(k_l2, n_hidden, n_output)

    out = net_forward(x, w1, b1, w2, b2)
    jax.block_until_ready(out)

    # Reference check in plain JAX (PyTorch semantics: y = x @ W.T + b).
    ref = jnp.maximum(x @ w1.T + b1.T, 0.0) @ w2.T + b2.T
    assert out.shape == (200, n_output)
    assert jnp.allclose(out, ref, atol=1e-5, rtol=1e-5)

    print("KERNEL_OK")
</pallas_src>

<mosaic_0001>
module attributes {stable_mosaic.version = 11 : i64} {
  func.func @mlp_kernel(%arg0: i32, %arg1: memref<2x128xf32, #tpu.memory_space<vmem>>, %arg2: memref<10x2xf32, #tpu.memory_space<vmem>>, %arg3: memref<10x1xf32, #tpu.memory_space<vmem>>, %arg4: memref<2x10xf32, #tpu.memory_space<vmem>>, %arg5: memref<2x1xf32, #tpu.memory_space<vmem>>, %arg6: memref<2x128xf32, #tpu.memory_space<vmem>>) attributes {dimension_semantics = [#tpu.dimension_semantics<parallel>], iteration_bounds = array<i64: 2>, scalar_prefetch = 0 : i64, scratch_operands = 0 : i64, tpu.core_type = #tpu.core_type<tc>, window_params = [{transform_indices = @transform_0, window_bounds = array<i64: 2, 128>}, {pipeline_mode = #tpu.pipeline_mode<synchronous>, transform_indices = @transform_1, window_bounds = array<i64: 10, 2>}, {pipeline_mode = #tpu.pipeline_mode<synchronous>, transform_indices = @transform_2, window_bounds = array<i64: 10, 1>}, {pipeline_mode = #tpu.pipeline_mode<synchronous>, transform_indices = @transform_3, window_bounds = array<i64: 2, 10>}, {pipeline_mode = #tpu.pipeline_mode<synchronous>, transform_indices = @transform_4, window_bounds = array<i64: 2, 1>}, {transform_indices = @transform_5, window_bounds = array<i64: 2, 128>}]} {
    %c0 = arith.constant 0 : index
    %c0_0 = arith.constant 0 : index
    %0 = vector.load %arg1[%c0, %c0_0] : memref<2x128xf32, #tpu.memory_space<vmem>>, vector<2x128xf32>
    %c0_1 = arith.constant 0 : index
    %c0_2 = arith.constant 0 : index
    %1 = vector.load %arg2[%c0_1, %c0_2] : memref<10x2xf32, #tpu.memory_space<vmem>>, vector<10x2xf32>
    %c0_3 = arith.constant 0 : index
    %c0_4 = arith.constant 0 : index
    %2 = vector.load %arg3[%c0_3, %c0_4] : memref<10x1xf32, #tpu.memory_space<vmem>>, vector<10x1xf32>
    %c0_5 = arith.constant 0 : index
    %c0_6 = arith.constant 0 : index
    %3 = vector.load %arg4[%c0_5, %c0_6] : memref<2x10xf32, #tpu.memory_space<vmem>>, vector<2x10xf32>
    %c0_7 = arith.constant 0 : index
    %c0_8 = arith.constant 0 : index
    %4 = vector.load %arg5[%c0_7, %c0_8] : memref<2x1xf32, #tpu.memory_space<vmem>>, vector<2x1xf32>
    %5 = vector.extract_strided_slice %1 {offsets = [0, 0], sizes = [10, 1], strides = [1, 1]} : vector<10x2xf32> to vector<10x1xf32>
    %6 = vector.extract_strided_slice %0 {offsets = [0, 0], sizes = [1, 128], strides = [1, 1]} : vector<2x128xf32> to vector<1x128xf32>
    %7 = vector.broadcast %5 : vector<10x1xf32> to vector<10x128xf32>
    %8 = vector.broadcast %6 : vector<1x128xf32> to vector<10x128xf32>
    %9 = arith.mulf %7, %8 : vector<10x128xf32>
    %10 = vector.broadcast %2 : vector<10x1xf32> to vector<10x128xf32>
    %11 = arith.addf %9, %10 : vector<10x128xf32>
    %12 = vector.extract_strided_slice %1 {offsets = [0, 1], sizes = [10, 1], strides = [1, 1]} : vector<10x2xf32> to vector<10x1xf32>
    %13 = vector.extract_strided_slice %0 {offsets = [1, 0], sizes = [1, 128], strides = [1, 1]} : vector<2x128xf32> to vector<1x128xf32>
    %14 = vector.broadcast %12 : vector<10x1xf32> to vector<10x128xf32>
    %15 = vector.broadcast %13 : vector<1x128xf32> to vector<10x128xf32>
    %16 = arith.mulf %14, %15 : vector<10x128xf32>
    %17 = arith.addf %11, %16 : vector<10x128xf32>
    %cst = arith.constant 0.000000e+00 : f32
    %18 = vector.broadcast %cst : f32 to vector<10x128xf32>
    %19 = arith.maximumf %17, %18 : vector<10x128xf32>
    %20 = vector.extract_strided_slice %3 {offsets = [0, 0], sizes = [2, 1], strides = [1, 1]} : vector<2x10xf32> to vector<2x1xf32>
    %21 = vector.extract_strided_slice %19 {offsets = [0, 0], sizes = [1, 128], strides = [1, 1]} : vector<10x128xf32> to vector<1x128xf32>
    %22 = vector.broadcast %20 : vector<2x1xf32> to vector<2x128xf32>
    %23 = vector.broadcast %21 : vector<1x128xf32> to vector<2x128xf32>
    %24 = arith.mulf %22, %23 : vector<2x128xf32>
    %25 = vector.broadcast %4 : vector<2x1xf32> to vector<2x128xf32>
    %26 = arith.addf %24, %25 : vector<2x128xf32>
    %27 = vector.extract_strided_slice %3 {offsets = [0, 1], sizes = [2, 1], strides = [1, 1]} : vector<2x10xf32> to vector<2x1xf32>
    %28 = vector.extract_strided_slice %19 {offsets = [1, 0], sizes = [1, 128], strides = [1, 1]} : vector<10x128xf32> to vector<1x128xf32>
    %29 = vector.broadcast %27 : vector<2x1xf32> to vector<2x128xf32>
    %30 = vector.broadcast %28 : vector<1x128xf32> to vector<2x128xf32>
    %31 = arith.mulf %29, %30 : vector<2x128xf32>
    %32 = arith.addf %26, %31 : vector<2x128xf32>
    %33 = vector.extract_strided_slice %3 {offsets = [0, 2], sizes = [2, 1], strides = [1, 1]} : vector<2x10xf32> to vector<2x1xf32>
    %34 = vector.extract_strided_slice %19 {offsets = [2, 0], sizes = [1, 128], strides = [1, 1]} : vector<10x128xf32> to vector<1x128xf32>
    %35 = vector.broadcast %33 : vector<2x1xf32> to vector<2x128xf32>
    %36 = vector.broadcast %34 : vector<1x128xf32> to vector<2x128xf32>
    %37 = arith.mulf %35, %36 : vector<2x128xf32>
    %38 = arith.addf %32, %37 : vector<2x128xf32>
    %39 = vector.extract_strided_slice %3 {offsets = [0, 3], sizes = [2, 1], strides = [1, 1]} : vector<2x10xf32> to vector<2x1xf32>
    %40 = vector.extract_strided_slice %19 {offsets = [3, 0], sizes = [1, 128], strides = [1, 1]} : vector<10x128xf32> to vector<1x128xf32>
    %41 = vector.broadcast %39 : vector<2x1xf32> to vector<2x128xf32>
    %42 = vector.broadcast %40 : vector<1x128xf32> to vector<2x128xf32>
    %43 = arith.mulf %41, %42 : vector<2x128xf32>
    %44 = arith.addf %38, %43 : vector<2x128xf32>
    %45 = vector.extract_strided_slice %3 {offsets = [0, 4], sizes = [2, 1], strides = [1, 1]} : vector<2x10xf32> to vector<2x1xf32>
    %46 = vector.extract_strided_slice %19 {offsets = [4, 0], sizes = [1, 128], strides = [1, 1]} : vector<10x128xf32> to vector<1x128xf32>
    %47 = vector.broadcast %45 : vector<2x1xf32> to vector<2x128xf32>
    %48 = vector.broadcast %46 : vector<1x128xf32> to vector<2x128xf32>
    %49 = arith.mulf %47, %48 : vector<2x128xf32>
    %50 = arith.addf %44, %49 : vector<2x128xf32>
    %51 = vector.extract_strided_slice %3 {offsets = [0, 5], sizes = [2, 1], strides = [1, 1]} : vector<2x10xf32> to vector<2x1xf32>
    %52 = vector.extract_strided_slice %19 {offsets = [5, 0], sizes = [1, 128], strides = [1, 1]} : vector<10x128xf32> to vector<1x128xf32>
    %53 = vector.broadcast %51 : vector<2x1xf32> to vector<2x128xf32>
    %54 = vector.broadcast %52 : vector<1x128xf32> to vector<2x128xf32>
    %55 = arith.mulf %53, %54 : vector<2x128xf32>
    %56 = arith.addf %50, %55 : vector<2x128xf32>
    %57 = vector.extract_strided_slice %3 {offsets = [0, 6], sizes = [2, 1], strides = [1, 1]} : vector<2x10xf32> to vector<2x1xf32>
    %58 = vector.extract_strided_slice %19 {offsets = [6, 0], sizes = [1, 128], strides = [1, 1]} : vector<10x128xf32> to vector<1x128xf32>
    %59 = vector.broadcast %57 : vector<2x1xf32> to vector<2x128xf32>
    %60 = vector.broadcast %58 : vector<1x128xf32> to vector<2x128xf32>
    %61 = arith.mulf %59, %60 : vector<2x128xf32>
    %62 = arith.addf %56, %61 : vector<2x128xf32>
    %63 = vector.extract_strided_slice %3 {offsets = [0, 7], sizes = [2, 1], strides = [1, 1]} : vector<2x10xf32> to vector<2x1xf32>
    %64 = vector.extract_strided_slice %19 {offsets = [7, 0], sizes = [1, 128], strides = [1, 1]} : vector<10x128xf32> to vector<1x128xf32>
    %65 = vector.broadcast %63 : vector<2x1xf32> to vector<2x128xf32>
    %66 = vector.broadcast %64 : vector<1x128xf32> to vector<2x128xf32>
    %67 = arith.mulf %65, %66 : vector<2x128xf32>
    %68 = arith.addf %62, %67 : vector<2x128xf32>
    %69 = vector.extract_strided_slice %3 {offsets = [0, 8], sizes = [2, 1], strides = [1, 1]} : vector<2x10xf32> to vector<2x1xf32>
    %70 = vector.extract_strided_slice %19 {offsets = [8, 0], sizes = [1, 128], strides = [1, 1]} : vector<10x128xf32> to vector<1x128xf32>
    %71 = vector.broadcast %69 : vector<2x1xf32> to vector<2x128xf32>
    %72 = vector.broadcast %70 : vector<1x128xf32> to vector<2x128xf32>
    %73 = arith.mulf %71, %72 : vector<2x128xf32>
    %74 = arith.addf %68, %73 : vector<2x128xf32>
    %75 = vector.extract_strided_slice %3 {offsets = [0, 9], sizes = [2, 1], strides = [1, 1]} : vector<2x10xf32> to vector<2x1xf32>
    %76 = vector.extract_strided_slice %19 {offsets = [9, 0], sizes = [1, 128], strides = [1, 1]} : vector<10x128xf32> to vector<1x128xf32>
    %77 = vector.broadcast %75 : vector<2x1xf32> to vector<2x128xf32>
    %78 = vector.broadcast %76 : vector<1x128xf32> to vector<2x128xf32>
    %79 = arith.mulf %77, %78 : vector<2x128xf32>
    %80 = arith.addf %74, %79 : vector<2x128xf32>
    %c0_9 = arith.constant 0 : index
    %c0_10 = arith.constant 0 : index
    %81 = vector.load %arg6[%c0_9, %c0_10] : memref<2x128xf32, #tpu.memory_space<vmem>>, vector<2x128xf32>
    tpu.vector_store %arg6[%c0_9, %c0_10], %80 {strides = array<i32>} : memref<2x128xf32, #tpu.memory_space<vmem>>, vector<2x128xf32>,
    return
  }
  func.func @transform_0(%arg0: i32) -> (i32, i32) {
    %c0_i32 = arith.constant 0 : i32
    %c0_i32_0 = arith.constant 0 : i32
    return %c0_i32, %arg0 : i32, i32
  }
  func.func @transform_1(%arg0: i32) -> (i32, i32) {
    %c0_i32 = arith.constant 0 : i32
    %c0_i32_0 = arith.constant 0 : i32
    %c0_i32_1 = arith.constant 0 : i32
    return %c0_i32, %c0_i32_0 : i32, i32
  }
  func.func @transform_2(%arg0: i32) -> (i32, i32) {
    %c0_i32 = arith.constant 0 : i32
    %c0_i32_0 = arith.constant 0 : i32
    %c0_i32_1 = arith.constant 0 : i32
    return %c0_i32, %c0_i32_0 : i32, i32
  }
  func.func @transform_3(%arg0: i32) -> (i32, i32) {
    %c0_i32 = arith.constant 0 : i32
    %c0_i32_0 = arith.constant 0 : i32
    %c0_i32_1 = arith.constant 0 : i32
    return %c0_i32, %c0_i32_0 : i32, i32
  }
  func.func @transform_4(%arg0: i32) -> (i32, i32) {
    %c0_i32 = arith.constant 0 : i32
    %c0_i32_0 = arith.constant 0 : i32
    %c0_i32_1 = arith.constant 0 : i32
    return %c0_i32, %c0_i32_0 : i32, i32
  }
  func.func @transform_5(%arg0: i32) -> (i32, i32) {
    %c0_i32 = arith.constant 0 : i32
    %c0_i32_0 = arith.constant 0 : i32
    return %c0_i32, %arg0 : i32, i32
  }
}

</mosaic_0001>

<llo_original>
// kernel: tpu_custom_call.1
$region0: #{tpu_custom_call.1}
  #allocation0 [shape = 'u32[]', space=smem, size = 0x4, offset = 0x4, fixed_abs, tag = 'smem constant byte address 0x4 - core index']
  #allocation1 [shape = 'u32[144,128]{1,0:T(1,128)}', space=vmem, size = 0x12000, scoped, tag = 'internal scratch']
  %s0 = inlined_call_operand.vmem [shape: f32[2,256], index: 0, kind: input, shape index: {}]
  %s1 = inlined_call_operand.vmem [shape: f32[10,2], index: 1, kind: input, shape index: {}]
  %s2 = inlined_call_operand.vmem [shape: f32[10,1], index: 2, kind: input, shape index: {}]
  %s3 = inlined_call_operand.vmem [shape: f32[2,10], index: 3, kind: input, shape index: {}]
  %s4 = inlined_call_operand.vmem [shape: f32[2,1], index: 4, kind: input, shape index: {}]
  %s5 = inlined_call_operand.hbm [shape: f32[2,256], index: 5, kind: output, shape index: {}]
  %s6 = sld [smem:[#allocation0]]
  $region53: #{tpu_custom_call.1} parent=0
    _
  %s8 = ssub.s32 1, %s6
  %s9 = scalar_select 0, %s8, %s6
  $region1: #{tpu_custom_call.1} parent=0
    #allocation2 [shape = 'u8[2048]{0}', space=vmem, size = 0x800, scoped, tag = 'output window, operand 0']
    #allocation3 [shape = 's32[2]{0}', space=sflag, size = 0x8, scoped, tag = 'scoped memory for tpu_custom_call.1']
    %10 = vsyncpa [#allocation3], 0
    %s11 = scalar_lea.sflag [#allocation3], 1
    %12 = vsyncpa %s11, 0
    loop: start=0, step=1, limit=4
    $region2: #{tpu_custom_call.1} parent=1 // loop_pre_header
      _
    $region3: #{tpu_custom_call.1} parent=1 // loop_header
      %s14 = sphi 0, %s18
      %p15 = scmp.ge.s32.totalorder %s14, 4
      %s24 = sphi 0, %s26
      %s27 = sphi 0, %s24
      %s28 = sphi 0, %s27
      %s44 = sphi 0, %s28
      %s48 = sphi 0, %s48
      %s50 = sphi 0, %s48
      %s51 = sphi 0, %s50
      %s65 = sphi 0, %s51
      %s69 = sphi 0, %s69
      %s71 = sphi 0, %s69
      %s72 = sphi 0, %s71
      %s86 = sphi 0, %s72
      %s90 = sphi 0, %s90
      %s92 = sphi 0, %s90
      %s93 = sphi 0, %s92
      %s107 = sphi 0, %s93
      %s111 = sphi 0, %s111
      %s113 = sphi 0, %s111
      %s114 = sphi 0, %s113
      %s128 = sphi 0, %s114
      %s134 = sphi 0, %s136
      %s137 = sphi 0, %s134
      %s138 = sphi 0, %s137
      %s154 = sphi 0, %s138
    $region4: #{tpu_custom_call.1} parent=1 // loop_header_branch
      %17 = sbr.rel (%p15) target = $region8
    $region5: #{tpu_custom_call.1} parent=1 // loop_body
      %s19 = ssub.s32 %s14, 1
      %s20 = ssub.s32 %s14, 2
      %s21 = sadd.s32 %s14, 1
      %s22 = ssub.s32 %s14, %s21
      %p23 = scmp.eq.s32.totalorder %s22, 0
      %s25 = sadd.s32 %s24, 1
      %s26 = scalar_select %p23, %s24, %s25
      %p29 = pneg %p23
      %p30 = scmp.eq.s32.totalorder %s14, 1
      %p31 = por %p29, %p30
      %p32 = scmp.ne.s32.totalorder %s24, %s27
      %p33 = scmp.eq.s32.totalorder %s14, 0
      %p34 = por %p32, %p33
      %p35 = scmp.ne.s32.totalorder %s24, %s27
      %p36 = scmp.eq.s32.totalorder %s19, 1
      %p37 = por %p35, %p36
      %p38 = scmp.ne.s32.totalorder %s27, %s28
      %p39 = scmp.eq.s32.totalorder %s19, 0
      %p40 = por %p38, %p39
      %p41 = scmp.ne.s32.totalorder %s27, %s28
      %p42 = scmp.eq.s32.totalorder %s20, 1
      %p43 = por %p41, %p42
      %p45 = scmp.ne.s32.totalorder %s28, %s44
      %p46 = scmp.eq.s32.totalorder %s20, 0
      %p47 = por %p45, %p46
      %s49 = sadd.s32 %s48, 1
      %p52 = scmp.eq.s32.totalorder %s14, 1
      %p53 = scmp.ne.s32.totalorder %s48, %s50
      %p54 = scmp.eq.s32.totalorder %s14, 0
      %p55 = por %p53, %p54
      %p56 = scmp.ne.s32.totalorder %s48, %s50
      %p57 = scmp.eq.s32.totalorder %s19, 1
      %p58 = por %p56, %p57
      %p59 = scmp.ne.s32.totalorder %s50, %s51
      %p60 = scmp.eq.s32.totalorder %s19, 0
      %p61 = por %p59, %p60
      %p62 = scmp.ne.s32.totalorder %s50, %s51
      %p63 = scmp.eq.s32.totalorder %s20, 1
      %p64 = por %p62, %p63
      %p66 = scmp.ne.s32.totalorder %s51, %s65
      %p67 = scmp.eq.s32.totalorder %s20, 0
      %p68 = por %p66, %p67
      %s70 = sadd.s32 %s69, 1
      %p73 = scmp.eq.s32.totalorder %s14, 1
      %p74 = scmp.ne.s32.totalorder %s69, %s71
      %p75 = scmp.eq.s32.totalorder %s14, 0
      %p76 = por %p74, %p75
      %p77 = scmp.ne.s32.totalorder %s69, %s71
      %p78 = scmp.eq.s32.totalorder %s19, 1
      %p79 = por %p77, %p78
      %p80 = scmp.ne.s32.totalorder %s71, %s72
      %p81 = scmp.eq.s32.totalorder %s19, 0
      %p82 = por %p80, %p81
      %p83 = scmp.ne.s32.totalorder %s71, %s72
      %p84 = scmp.eq.s32.totalorder %s20, 1
      %p85 = por %p83, %p84
      %p87 = scmp.ne.s32.totalorder %s72, %s86
      %p88 = scmp.eq.s32.totalorder %s20, 0
      %p89 = por %p87, %p88
      %s91 = sadd.s32 %s90, 1
      %p94 = scmp.eq.s32.totalorder %s14, 1
      %p95 = scmp.ne.s32.totalorder %s90, %s92
      %p96 = scmp.eq.s32.totalorder %s14, 0
      %p97 = por %p95, %p96
      %p98 = scmp.ne.s32.totalorder %s90, %s92
      %p99 = scmp.eq.s32.totalorder %s19, 1
      %p100 = por %p98, %p99
      %p101 = scmp.ne.s32.totalorder %s92, %s93
      %p102 = scmp.eq.s32.totalorder %s19, 0
      %p103 = por %p101, %p102
      %p104 = scmp.ne.s32.totalorder %s92, %s93
      %p105 = scmp.eq.s32.totalorder %s20, 1
      %p106 = por %p104, %p105
      %p108 = scmp.ne.s32.totalorder %s93, %s107
      %p109 = scmp.eq.s32.totalorder %s20, 0
      %p110 = por %p108, %p109
      %s112 = sadd.s32 %s111, 1
      %p115 = scmp.eq.s32.totalorder %s14, 1
      %p116 = scmp.ne.s32.totalorder %s111, %s113
      %p117 = scmp.eq.s32.totalorder %s14, 0
      %p118 = por %p116, %p117
      %p119 = scmp.ne.s32.totalorder %s111, %s113
      %p120 = scmp.eq.s32.totalorder %s19, 1
      %p121 = por %p119, %p120
      %p122 = scmp.ne.s32.totalorder %s113, %s114
      %p123 = scmp.eq.s32.totalorder %s19, 0
      %p124 = por %p122, %p123
      %p125 = scmp.ne.s32.totalorder %s113, %s114
      %p126 = scmp.eq.s32.totalorder %s20, 1
      %p127 = por %p125, %p126
      %p129 = scmp.ne.s32.totalorder %s114, %s128
      %p130 = scmp.eq.s32.totalorder %s20, 0
      %p131 = por %p129, %p130
      %s132 = ssub.s32 %s14, %s21
      %p133 = scmp.eq.s32.totalorder %s132, 0
      %s135 = sadd.s32 %s134, 1
      %s136 = scalar_select %p133, %s134, %s135
      %p139 = pneg %p133
      %p140 = scmp.eq.s32.totalorder %s14, 1
      %p141 = por %p139, %p140
      %p142 = scmp.ne.s32.totalorder %s134, %s137
      %p143 = scmp.eq.s32.totalorder %s14, 0
      %p144 = por %p142, %p143
      %p145 = scmp.ne.s32.totalorder %s134, %s137
      %p146 = scmp.eq.s32.totalorder %s19, 1
      %p147 = por %p145, %p146
      %p148 = scmp.ne.s32.totalorder %s137, %s138
      %p149 = scmp.eq.s32.totalorder %s19, 0
      %p150 = por %p148, %p149
      %p151 = scmp.ne.s32.totalorder %s137, %s138
      %p152 = scmp.eq.s32.totalorder %s20, 1
      %p153 = por %p151, %p152
      %p155 = scmp.ne.s32.totalorder %s138, %s154
      %p156 = scmp.eq.s32.totalorder %s20, 0
      %p157 = por %p155, %p156
      %p158 = scmp.le.s32.totalorder 1, %s14
      %p159 = scmp.lt.s32.totalorder %s14, 3
      %p160 = pnand %p158, %p159
      %p161 = pneg %p160
      // Predicated region
      $region9: #{tpu_custom_call.1} parent=5 // pred_check
        _
      $region10: #{tpu_custom_call.1} parent=5 // pred_check_branch
        %163 = sbr.rel (%p160) target = $region12
      $region11: #{tpu_custom_call.1} parent=5 // pred_region
        %s164 = ssub.s32 %s14, 1
        // Predicated region
        $region13: #{tpu_custom_call.1} parent=11 // pred_check
          %p165 = pneg %p61
        $region14: #{tpu_custom_call.1} parent=11 // pred_check_branch
          %167 = sbr.rel (%p165) target = $region16
        $region15: #{tpu_custom_call.1} parent=11 // pred_region
          _
        $region16: #{tpu_custom_call.1} parent=11 // pred_fallthru
          _
        // Predicated region
        $region17: #{tpu_custom_call.1} parent=11 // pred_check
          %p168 = pneg %p82
        $region18: #{tpu_custom_call.1} parent=11 // pred_check_branch
          %170 = sbr.rel (%p168) target = $region20
        $region19: #{tpu_custom_call.1} parent=11 // pred_region
          _
        $region20: #{tpu_custom_call.1} parent=11 // pred_fallthru
          _
        // Predicated region
        $region21: #{tpu_custom_call.1} parent=11 // pred_check
          %p171 = pneg %p103
        $region22: #{tpu_custom_call.1} parent=11 // pred_check_branch
          %173 = sbr.rel (%p171) target = $region24
        $region23: #{tpu_custom_call.1} parent=11 // pred_region
          _
        $region24: #{tpu_custom_call.1} parent=11 // pred_fallthru
          _
        // Predicated region
        $region25: #{tpu_custom_call.1} parent=11 // pred_check
          %p174 = pneg %p124
        $region26: #{tpu_custom_call.1} parent=11 // pred_check_branch
          %176 = sbr.rel (%p174) target = $region28
        $region27: #{tpu_custom_call.1} parent=11 // pred_region
          _
        $region28: #{tpu_custom_call.1} parent=11 // pred_fallthru
          _
      $region12: #{tpu_custom_call.1} parent=5 // pred_fallthru
        _
      %p177 = scmp.lt.s32.totalorder %s14, 2
      // Predicated region
      $region29: #{tpu_custom_call.1} parent=5 // pred_check
        %p178 = pneg %p177
      $region30: #{tpu_custom_call.1} parent=5 // pred_check_branch
        %180 = sbr.rel (%p178) target = $region32
      $region31: #{tpu_custom_call.1} parent=5 // pred_region
        // Predicated region
        $region33: #{tpu_custom_call.1} parent=31 // pred_check
          %p181 = pneg %p34
        $region34: #{tpu_custom_call.1} parent=31 // pred_check_branch
          %183 = sbr.rel (%p181) target = $region36
        $region35: #{tpu_custom_call.1} parent=31 // pred_region
          %p184 = scmp.lt.s32.totalorder %s14, 1
          %s185 = scalar_select %p184, %s14, 1
          %s186 = smul.addr %s185, 2
          %s187 = scalar_lea.vmem %s0, %s186
        $region36: #{tpu_custom_call.1} parent=31 // pred_fallthru
          _
      $region32: #{tpu_custom_call.1} parent=5 // pred_fallthru
        _
      %p188 = scmp.le.s32.totalorder 1, %s14
      %p189 = scmp.lt.s32.totalorder %s14, 3
      %p190 = pnand %p188, %p189
      %p191 = pneg %p190
      // Predicated region
      $region37: #{tpu_custom_call.1} parent=5 // pred_check
        _
      $region38: #{tpu_custom_call.1} parent=5 // pred_check_branch
        %193 = sbr.rel (%p190) target = $region40
      $region39: #{tpu_custom_call.1} parent=5 // pred_region
        %s194 = ssub.s32 %s14, 1
        %p195 = scmp.lt.s32.totalorder %s19, 1
        %s196 = scalar_select %p195, %s19, 1
        %s197 = smul.addr %s196, 2
        %s198 = scalar_lea.vmem %s0, %s197
        %p199 = pneg %p40
        %p200 = pneg %p37
        %p201 = pneg %p61
        %p202 = pneg %p58
        %p203 = pneg %p82
        %p204 = pneg %p79
        %p205 = pneg %p103
        %p206 = pneg %p100
        %p207 = pneg %p124
        %p208 = pneg %p121
        %p209 = pneg %p150
        %p210 = pneg %p147
        %s211 = sand.u32 %s137, 1
        %s212 = scalar_lea.sflag [#allocation3], %s211
        %s213 = sand.u32 %s137, 1
        %s214 = smul.addr %s213, 2
        %s215 = scalar_lea.vmem [#allocation2], %s214
        %p216 = scmp.lt.s32.totalorder %s19, 1
        %s217 = scalar_select %p216, %s19, 1
        %s218 = smul.addr %s217, 2
        %s219 = scalar_lea.vmem %s0, %s218
        %v220 = vld [vmem:[%s219] sm:$0x3]
        %v221 = vld [vmem:[%s1] sm:$0xff]
        %v222 = vld [vmem:[%s1 + $0x8] sm:$0x3]
        %v223 = vld [vmem:[%s2] sm:$0xff]
        %v224 = vld [vmem:[%s2 + $0x8] sm:$0x3]
        %v225 = vld [vmem:[%s3] sm:$0x3]
        %v226 = vld [vmem:[%s4] sm:$0x3]
        %228 = vset.pattern.permute.xlu0 0
        %229 = vperm.xlu0 %228, %v221
        %v230 = vpop.permute.xlu0 %229
        %233 = vset.pattern.permute.xlu0 0
        %234 = vperm.xlu0 %233, %v222
        %v235 = vpop.permute.xlu0 %234
        %v237 = vlaneseq
        %v238 = vshrl.u32 %v237, 7
        %v239 = vsub.s32 0, %v238
        %v240 = vrot.slane %v220, %v239
        %v241 = vmul.f32 %v230, %v240
        %v242 = vmul.f32 %v235, %v240
        %244 = vset.pattern.permute.xlu0 0
        %245 = vperm.xlu0 %244, %v223
        %v246 = vpop.permute.xlu0 %245
        %249 = vset.pattern.permute.xlu0 0
        %250 = vperm.xlu0 %249, %v224
        %v251 = vpop.permute.xlu0 %250
        %v253 = vadd.f32 %v241, %v246
        %v254 = vadd.f32 %v242, %v251
        %255 = vset.pattern.permute.xlu0 1
        %256 = vperm.xlu0 %255, %v221
        %v257 = vpop.permute.xlu0 %256
        %259 = vset.pattern.permute.xlu0 1
        %260 = vperm.xlu0 %259, %v222
        %v261 = vpop.permute.xlu0 %260
        %v263 = vlaneseq
        %v264 = vshrl.u32 %v263, 7
        %v265 = vsub.s32 1, %v264
        %v266 = vrot.slane %v220, %v265
        %v267 = vmul.f32 %v257, %v266
        %v268 = vmul.f32 %v261, %v266
        %v269 = vadd.f32 %v253, %v267
        %v270 = vadd.f32 %v254, %v268
        %v271 = vmax.f32 %v269, 0.0
        %v272 = vmax.f32 %v270, 0.0
        %274 = vset.pattern.permute.xlu0 0
        %275 = vperm.xlu0 %274, %v225
        %v276 = vpop.permute.xlu0 %275
        %v278 = vlaneseq
        %v279 = vshrl.u32 %v278, 7
        %v280 = vsub.s32 0, %v279
        %v281 = vrot.slane %v271, %v280
        %v282 = vmul.f32 %v276, %v281
        %284 = vset.pattern.permute.xlu0 0
        %285 = vperm.xlu0 %284, %v226
        %v286 = vpop.permute.xlu0 %285
        %v288 = vadd.f32 %v282, %v286
        %289 = vset.pattern.permute.xlu0 1
        %290 = vperm.xlu0 %289, %v225
        %v291 = vpop.permute.xlu0 %290
        %v293 = vlaneseq
        %v294 = vshrl.u32 %v293, 7
        %v295 = vsub.s32 1, %v294
        %v296 = vrot.slane %v271, %v295
        %v297 = vmul.f32 %v291, %v296
        %v298 = vadd.f32 %v288, %v297
        %299 = vset.pattern.permute.xlu0 2
        %300 = vperm.xlu0 %299, %v225
        %v301 = vpop.permute.xlu0 %300
        %v303 = vlaneseq
        %v304 = vshrl.u32 %v303, 7
        %v305 = vsub.s32 2, %v304
        %v306 = vrot.slane %v271, %v305
        %v307 = vmul.f32 %v301, %v306
        %v308 = vadd.f32 %v298, %v307
        %309 = vset.pattern.permute.xlu0 3
        %310 = vperm.xlu0 %309, %v225
        %v311 = vpop.permute.xlu0 %310
        %v313 = vlaneseq
        %v314 = vshrl.u32 %v313, 7
        %v315 = vsub.s32 3, %v314
        %v316 = vrot.slane %v271, %v315
        %v317 = vmul.f32 %v311, %v316
        %v318 = vadd.f32 %v308, %v317
        %319 = vset.pattern.permute.xlu0 4
        %320 = vperm.xlu0 %319, %v225
        %v321 = vpop.permute.xlu0 %320
        %v323 = vlaneseq
        %v324 = vshrl.u32 %v323, 7
        %v325 = vsub.s32 4, %v324
        %v326 = vrot.slane %v271, %v325
        %v327 = vmul.f32 %v321, %v326
        %v328 = vadd.f32 %v318, %v327
        %329 = vset.pattern.permute.xlu0 5
        %330 = vperm.xlu0 %329, %v225
        %v331 = vpop.permute.xlu0 %330
        %v333 = vlaneseq
        %v334 = vshrl.u32 %v333, 7
        %v335 = vsub.s32 5, %v334
        %v336 = vrot.slane %v271, %v335
        %v337 = vmul.f32 %v331, %v336
        %v338 = vadd.f32 %v328, %v337
        %339 = vset.pattern.permute.xlu0 6
        %340 = vperm.xlu0 %339, %v225
        %v341 = vpop.permute.xlu0 %340
        %v343 = vlaneseq
        %v344 = vshrl.u32 %v343, 7
        %v345 = vsub.s32 6, %v344
        %v346 = vrot.slane %v271, %v345
        %v347 = vmul.f32 %v341, %v346
        %v348 = vadd.f32 %v338, %v347
        %349 = vset.pattern.permute.xlu0 7
        %350 = vperm.xlu0 %349, %v225
        %v351 = vpop.permute.xlu0 %350
        %v353 = vlaneseq
        %v354 = vshrl.u32 %v353, 7
        %v355 = vsub.s32 7, %v354
        %v356 = vrot.slane %v271, %v355
        %v357 = vmul.f32 %v351, %v356
        %v358 = vadd.f32 %v348, %v357
        %359 = vset.pattern.permute.xlu0 8
        %360 = vperm.xlu0 %359, %v225
        %v361 = vpop.permute.xlu0 %360
        %v363 = vlaneseq
        %v364 = vshrl.u32 %v363, 7
        %v365 = vsub.s32 0, %v364
        %v366 = vrot.slane %v272, %v365
        %v367 = vmul.f32 %v361, %v366
        %v368 = vadd.f32 %v358, %v367
        %369 = vset.pattern.permute.xlu0 9
        %370 = vperm.xlu0 %369, %v225
        %v371 = vpop.permute.xlu0 %370
        %v373 = vlaneseq
        %v374 = vshrl.u32 %v373, 7
        %v375 = vsub.s32 1, %v374
        %v376 = vrot.slane %v272, %v375
        %v377 = vmul.f32 %v371, %v376
        %v378 = vadd.f32 %v368, %v377
        %379 = vst [vmem:[%s215] sm:$0x3] %v378
        %s380 = sand.u32 %s137, 1
        %s381 = scalar_lea.sflag [#allocation3], %s380
        %s382 = sand.u32 %s137, 1
        %s383 = smul.addr %s382, 2
        %s384 = scalar_lea.vmem [#allocation2], %s383
        // Predicated region
        $region41: #{tpu_custom_call.1} parent=39 // pred_check
          %p385 = pneg %p147
        $region42: #{tpu_custom_call.1} parent=39 // pred_check_branch
          %387 = sbr.rel (%p385) target = $region44
        $region43: #{tpu_custom_call.1} parent=39 // pred_region
          %s389 = ssub.s32 32, 32
          %390 = vsyncadd %s381, %s389
          %s391 = smul.addr %s19, 32
          %s392 = scalar_lea.hbm %s5, %s391
          %s394 = sshll.u32 %s384, 4
          %s395 = int_to_ptr.vmem [resolvable:$true] %s394
          %397 = dma.vmem_to_hbm [thread:$0]  %s395, 32, %s392, %s381
        $region44: #{tpu_custom_call.1} parent=39 // pred_fallthru
          _
      $region40: #{tpu_custom_call.1} parent=5 // pred_fallthru
        _
      %p398 = scmp.le.s32.totalorder 2, %s14
      // Predicated region
      $region45: #{tpu_custom_call.1} parent=5 // pred_check
        %p399 = pneg %p398
      $region46: #{tpu_custom_call.1} parent=5 // pred_check_branch
        %401 = sbr.rel (%p399) target = $region48
      $region47: #{tpu_custom_call.1} parent=5 // pred_region
        %s402 = ssub.s32 %s14, 2
        // Predicated region
        $region49: #{tpu_custom_call.1} parent=47 // pred_check
          %p403 = pneg %p153
        $region50: #{tpu_custom_call.1} parent=47 // pred_check_branch
          %405 = sbr.rel (%p403) target = $region52
        $region51: #{tpu_custom_call.1} parent=47 // pred_region
          %s406 = sand.u32 %s138, 1
          %s407 = scalar_lea.sflag [#allocation3], %s406
          %s408 = sand.u32 %s138, 1
          %s409 = smul.addr %s408, 2
          %s410 = scalar_lea.vmem [#allocation2], %s409
          %411 = dma.done %s407, 32
        $region52: #{tpu_custom_call.1} parent=47 // pred_fallthru
          _
      $region48: #{tpu_custom_call.1} parent=5 // pred_fallthru
        _
    $region6: #{tpu_custom_call.1} parent=1 // loop_footer
      %s18 = sadd.s32 1, %s14
    $region7: #{tpu_custom_call.1} parent=1 // loop_footer_branch
      %13 = sbr.rel target = $region3
    $region8: #{tpu_custom_call.1} parent=1 // loop_exit
      _
    %412 = vsyncpa [#allocation3], 1
    %s413 = scalar_lea.sflag [#allocation3], 1
    %414 = vsyncpa %s413, 1

</llo_original>
